<compile_context>
chip_gen: v7x
topology: tpu7x:2x2x1
jax: 0.10.0
libtpu: 0.0.40
codegen_flags: <defaults>
</compile_context>

<pallas_src>
import functools

import jax
import jax.numpy as jnp
from jax import lax
from jax.experimental import pallas as pl
from jax.experimental.pallas import tpu as pltpu

BN_EPS = 1e-5


# ----------------------------- Pallas kernels --------------------------------
def _conv_stats_kernel(x_ref, w_ref, z_ref, sum_ref, sq_ref, *, h, w, c):
    """Pass 1: 3x3 conv over one padded image plane + per-image BN partials.

    x_ref  : (1, C, (H+2)*(W+2)) bf16 -- zero-padded plane, spatial flattened
    w_ref  : (3, C, 3C)          bf16 -- folded weights, (kh, Cout, kw*C + Cin)
    z_ref  : (1, C, H*W)         bf16 -- conv output (pre-BN)
    sum_ref: (1, C, 1)           f32  -- per-image channel sum
    sq_ref : (1, C, 1)           f32  -- per-image channel sum of squares
    """
    wp = w + 2
    l = (h - 1) * wp + w                       # "output-side shift" length
    xb = x_ref[0]                              # (C, P) bf16, P = (H+2)*(W+2)
    acc = jnp.zeros((c, l), jnp.float32)
    # 3x3 conv as 3 accumulated MXU matmuls with K=3C: the three kw taps are
    # folded into the contraction dim; kh/kw shifts are lane-offset slices of
    # the flat padded plane, so operand builds need no sublane<->lane relayout.
    for kh in range(3):                        # static unroll
        xop = jnp.concatenate(
            [xb[:, kh * wp + kw: kh * wp + kw + l] for kw in range(3)], axis=0)
        acc = acc + jnp.dot(w_ref[kh], xop, preferred_element_type=jnp.float32)
    # Columns i*(W+2)+j with j < W are the valid outputs; the 2 columns between
    # rows hold wrap-around garbage.  Compact to (C, H*W) with lane-space copies.
    zc = jnp.concatenate([acc[:, i * wp: i * wp + w] for i in range(h)], axis=1)
    z_ref[0] = zc.astype(z_ref.dtype)          # bf16 HBM round trip
    # One-pass stats partials (combined across the batch by tiny XLA ops).
    # TODO(synk): E[y^2]-E[y]^2 in f32 can cancel if conv outputs are far from
    # zero-mean; switch to a Welford-style tile combine if that ever matters.
    sum_ref[0] = jnp.sum(zc, axis=1, keepdims=True)
    sq_ref[0] = jnp.sum(zc * zc, axis=1, keepdims=True)


def _bn_residual_kernel(z_ref, res_ref, scale_ref, shift_ref, out_ref):
    """Pass 2: out = z * scale + shift + residual (BN affine pre-folded)."""
    out_ref[0] = (z_ref[0].astype(jnp.float32) * scale_ref[...]
                  + shift_ref[...] + res_ref[0])


# ------------------------------ JAX wrapper -----------------------------------
def dfem_block_forward(x, params):
    """x: (N, C, H, W) float32.  Returns (N, C, H, W) float32."""
    n, c, h, w = x.shape
    hp, wp = h + 2, w + 2
    p = hp * wp
    hw = h * w
    l = (h - 1) * wp + w

    # TODO(synk): SpaFEM/SpeFEM/_3DLPFEM reference undefined classes -> identity,
    # so x1 = x2 = residual + x = 2x and conv(cat(2x, 2x), W) + b ==
    # 2*conv(x, W[:, :C] + W[:, C:]) + b; the bias is dropped because
    # training-mode BN's mean subtraction cancels it exactly.
    w_fold = 2.0 * (params["conv_w"][:, :c] + params["conv_w"][:, c:])      # (C, C, 3, 3)
    # Layout (kh, Cout, kw*C + Cin) so each kh-row matmul contracts over K = 3C.
    w_k = jnp.transpose(w_fold, (2, 0, 3, 1)).reshape(3, c, 3 * c).astype(jnp.bfloat16)

    # NCHW-native path: one fused pad + bf16 cast; all reshapes below are
    # contiguous-minor-dim reshapes (free at the HBM level).
    x_pad = jnp.pad(x.astype(jnp.bfloat16), ((0, 0), (0, 0), (1, 1), (1, 1)))
    x_flat = x_pad.reshape(n, c, p)                                          # (N, C, P) bf16
    res_flat = x.reshape(n, c, hw)                                           # residual, f32

    # Explicit VMEM budget (v7x has only 64 MiB physical; v5e/v6e have 128 MiB).
    blk = (2 * c * p * 2) + (2 * 3 * c * 3 * c * 2) + (2 * c * hw * 2) \
          + (c * l * 4) + (2 * 3 * c * l * 2)
    vmem_limit = int(min(48 * 2 ** 20, max(16 * 2 ** 20, 4 * blk)))
    # TODO(synk): for images whose padded plane exceeds the VMEM budget, tile H
    # with pl.Element halo windows (or a manual-DMA double buffer) instead of
    # whole-plane blocks; not needed at these shapes.
    cparams = pltpu.CompilerParams(dimension_semantics=("parallel",),
                                   vmem_limit_bytes=vmem_limit)

    # ---------------- pass 1: conv planes + per-image BN partials ----------------
    z, ssum, ssq = pl.pallas_call(
        functools.partial(_conv_stats_kernel, h=h, w=w, c=c),
        grid=(n,),
        in_specs=[
            pl.BlockSpec((1, c, p), lambda i: (i, 0, 0)),
            pl.BlockSpec((3, c, 3 * c), lambda i: (0, 0, 0)),
        ],
        out_specs=[
            pl.BlockSpec((1, c, hw), lambda i: (i, 0, 0)),
            pl.BlockSpec((1, c, 1), lambda i: (i, 0, 0)),
            pl.BlockSpec((1, c, 1), lambda i: (i, 0, 0)),
        ],
        out_shape=[
            jax.ShapeDtypeStruct((n, c, hw), jnp.bfloat16),   # bf16 z: half the inter-pass traffic
            jax.ShapeDtypeStruct((n, c, 1), jnp.float32),
            jax.ShapeDtypeStruct((n, c, 1), jnp.float32),
        ],
        compiler_params=cparams,
    )(x_flat, w_k)

    # ------------- tiny (C,)-sized BN finalize (scale/shift fold) --------------
    p_total = float(n * hw)
    ch_sum = jnp.sum(ssum, axis=0).reshape(c)
    ch_sq = jnp.sum(ssq, axis=0).reshape(c)
    mean = ch_sum / p_total
    var = jnp.maximum(ch_sq / p_total - mean * mean, 0.0)
    inv = lax.rsqrt(var + BN_EPS)
    gamma = params["bn_gamma"].astype(jnp.float32)
    beta = params["bn_beta"].astype(jnp.float32)
    scale = (gamma * inv).reshape(c, 1)
    shift = (beta - mean * gamma * inv).reshape(c, 1)

    # ---------------- pass 2: out = z*scale + shift + residual -----------------
    # TODO(synk): _3DLPFEM (undefined deps) is identity here, so the final result
    # is residual + BN(conv(...)).  Residual kept f32 for an exact add.
    out_flat = pl.pallas_call(
        _bn_residual_kernel,
        grid=(n,),
        in_specs=[
            pl.BlockSpec((1, c, hw), lambda i: (i, 0, 0)),
            pl.BlockSpec((1, c, hw), lambda i: (i, 0, 0)),
            pl.BlockSpec((c, 1), lambda i: (0, 0)),
            pl.BlockSpec((c, 1), lambda i: (0, 0)),
        ],
        out_specs=pl.BlockSpec((1, c, hw), lambda i: (i, 0, 0)),
        out_shape=jax.ShapeDtypeStruct((n, c, hw), jnp.float32),
        compiler_params=cparams,
    )(z, res_flat, scale, shift)

    return out_flat.reshape(n, c, h, w)       # free reshape, NCHW output directly


# --------------------------- pure-JAX reference -------------------------------
def dfem_block_reference(x, params):
    residual = x
    x1 = residual + x                       # identity SpaFEM stack
    x2 = residual + x                       # identity SpeFEM stack
    xc = jnp.concatenate([x1, x2], axis=1)
    y = lax.conv_general_dilated(
        xc, params["conv_w"], window_strides=(1, 1), padding="SAME",
        dimension_numbers=("NCHW", "OIHW", "NCHW"))
    y = y + params["conv_b"][None, :, None, None]
    mean = jnp.mean(y, axis=(0, 2, 3), keepdims=True)
    var = jnp.mean((y - mean) ** 2, axis=(0, 2, 3), keepdims=True)
    y = (y - mean) * lax.rsqrt(var + BN_EPS)
    y = y * params["bn_gamma"][None, :, None, None] + params["bn_beta"][None, :, None, None]
    return residual + y


# --------------------------------- main ----------------------------------------
if __name__ == "__main__":
    key = jax.random.PRNGKey(0)
    k_x, k_w, k_b = jax.random.split(key, 3)

    N, C, H, W = 2, 4, 16, 16   # conv_inchannels = C
    x = jax.random.normal(k_x, (N, C, H, W), dtype=jnp.float32)

    # Deterministic synthetic parameters for Conv2d(2C -> C, k=3, pad=1) + BatchNorm2d(C).
    fan_in = 2 * C * 3 * 3
    params = {
        "conv_w": jax.random.normal(k_w, (C, 2 * C, 3, 3), dtype=jnp.float32)
                  * (2.0 / fan_in) ** 0.5,
        "conv_b": jax.random.normal(k_b, (C,), dtype=jnp.float32) * 0.05,
        "bn_gamma": jnp.ones((C,), dtype=jnp.float32),   # PyTorch BN init
        "bn_beta": jnp.zeros((C,), dtype=jnp.float32),
    }

    fwd = jax.jit(dfem_block_forward)
    out = jax.block_until_ready(fwd(x, params))

    ref = dfem_block_reference(x, params)
    assert out.shape == (N, C, H, W)
    # bf16 MXU inputs + bf16 z round trip (f32 accumulation) -> relaxed tolerance.
    max_err = float(jnp.max(jnp.abs(out - ref)))
    assert jnp.allclose(out, ref, atol=5e-2, rtol=5e-2), f"max err {max_err}"

    print("KERNEL_OK")
</pallas_src>

<mosaic_0001>
module attributes {stable_mosaic.version = 11 : i64} {
  func.func @_conv_stats_kernel(%arg0: i32, %arg1: memref<1x4x324xbf16, #tpu.memory_space<vmem>>, %arg2: memref<3x4x12xbf16, #tpu.memory_space<vmem>>, %arg3: memref<1x4x256xbf16, #tpu.memory_space<vmem>>, %arg4: memref<1x4x1xf32, #tpu.memory_space<vmem>>, %arg5: memref<1x4x1xf32, #tpu.memory_space<vmem>>) attributes {dimension_semantics = [#tpu.dimension_semantics<parallel>], iteration_bounds = array<i64: 2>, scalar_prefetch = 0 : i64, scratch_operands = 0 : i64, tpu.core_type = #tpu.core_type<tc>, window_params = [{transform_indices = @transform_0, window_bounds = array<i64: 1, 4, 324>}, {pipeline_mode = #tpu.pipeline_mode<synchronous>, transform_indices = @transform_1, window_bounds = array<i64: 3, 4, 12>}, {transform_indices = @transform_2, window_bounds = array<i64: 1, 4, 256>}, {transform_indices = @transform_3, window_bounds = array<i64: 1, 4, 1>}, {transform_indices = @transform_4, window_bounds = array<i64: 1, 4, 1>}]} {
    %c0 = arith.constant 0 : index
    %c0_0 = arith.constant 0 : index
    %c0_1 = arith.constant 0 : index
    %0 = vector.load %arg1[%c0, %c0_0, %c0_1] : memref<1x4x324xbf16, #tpu.memory_space<vmem>>, vector<1x4x324xbf16>
    %1 = vector.shape_cast %0 : vector<1x4x324xbf16> to vector<4x324xbf16>
    %cst = arith.constant 0.000000e+00 : f32
    %2 = vector.broadcast %cst : f32 to vector<4x286xf32>
    %3 = vector.extract_strided_slice %1 {offsets = [0, 0], sizes = [4, 286], strides = [1, 1]} : vector<4x324xbf16> to vector<4x286xbf16>
    %4 = vector.extract_strided_slice %1 {offsets = [0, 1], sizes = [4, 286], strides = [1, 1]} : vector<4x324xbf16> to vector<4x286xbf16>
    %5 = vector.extract_strided_slice %1 {offsets = [0, 2], sizes = [4, 286], strides = [1, 1]} : vector<4x324xbf16> to vector<4x286xbf16>
    %6 = tpu.concatenate %3, %4, %5 in 0 : vector<4x286xbf16>, vector<4x286xbf16>, vector<4x286xbf16> -> vector<12x286xbf16>
    %c0_2 = arith.constant 0 : index
    %c0_3 = arith.constant 0 : index
    %c0_4 = arith.constant 0 : index
    %7 = vector.load %arg2[%c0_2, %c0_3, %c0_4] : memref<3x4x12xbf16, #tpu.memory_space<vmem>>, vector<1x4x12xbf16>
    %8 = vector.shape_cast %7 : vector<1x4x12xbf16> to vector<4x12xbf16>
    %cst_5 = arith.constant dense<0.000000e+00> : vector<4x286xf32>
    %9 = tpu.matmul %8, %6, %cst_5 {dimension_numbers = #tpu.dot_dimension_numbers<[1], [0], [0], [1], [0, 0, 1, 1], [], []>} : vector<4x12xbf16>, vector<12x286xbf16>, vector<4x286xf32> -> vector<4x286xf32>
    %10 = arith.addf %2, %9 : vector<4x286xf32>
    %11 = vector.extract_strided_slice %1 {offsets = [0, 18], sizes = [4, 286], strides = [1, 1]} : vector<4x324xbf16> to vector<4x286xbf16>
    %12 = vector.extract_strided_slice %1 {offsets = [0, 19], sizes = [4, 286], strides = [1, 1]} : vector<4x324xbf16> to vector<4x286xbf16>
    %13 = vector.extract_strided_slice %1 {offsets = [0, 20], sizes = [4, 286], strides = [1, 1]} : vector<4x324xbf16> to vector<4x286xbf16>
    %14 = tpu.concatenate %11, %12, %13 in 0 : vector<4x286xbf16>, vector<4x286xbf16>, vector<4x286xbf16> -> vector<12x286xbf16>
    %c1 = arith.constant 1 : index
    %c0_6 = arith.constant 0 : index
    %c0_7 = arith.constant 0 : index
    %15 = vector.load %arg2[%c1, %c0_6, %c0_7] : memref<3x4x12xbf16, #tpu.memory_space<vmem>>, vector<1x4x12xbf16>
    %16 = vector.shape_cast %15 : vector<1x4x12xbf16> to vector<4x12xbf16>
    %cst_8 = arith.constant dense<0.000000e+00> : vector<4x286xf32>
    %17 = tpu.matmul %16, %14, %cst_8 {dimension_numbers = #tpu.dot_dimension_numbers<[1], [0], [0], [1], [0, 0, 1, 1], [], []>} : vector<4x12xbf16>, vector<12x286xbf16>, vector<4x286xf32> -> vector<4x286xf32>
    %18 = arith.addf %10, %17 : vector<4x286xf32>
    %19 = vector.extract_strided_slice %1 {offsets = [0, 36], sizes = [4, 286], strides = [1, 1]} : vector<4x324xbf16> to vector<4x286xbf16>
    %20 = vector.extract_strided_slice %1 {offsets = [0, 37], sizes = [4, 286], strides = [1, 1]} : vector<4x324xbf16> to vector<4x286xbf16>
    %21 = vector.extract_strided_slice %1 {offsets = [0, 38], sizes = [4, 286], strides = [1, 1]} : vector<4x324xbf16> to vector<4x286xbf16>
    %22 = tpu.concatenate %19, %20, %21 in 0 : vector<4x286xbf16>, vector<4x286xbf16>, vector<4x286xbf16> -> vector<12x286xbf16>
    %c2 = arith.constant 2 : index
    %c0_9 = arith.constant 0 : index
    %c0_10 = arith.constant 0 : index
    %23 = vector.load %arg2[%c2, %c0_9, %c0_10] : memref<3x4x12xbf16, #tpu.memory_space<vmem>>, vector<1x4x12xbf16>
    %24 = vector.shape_cast %23 : vector<1x4x12xbf16> to vector<4x12xbf16>
    %cst_11 = arith.constant dense<0.000000e+00> : vector<4x286xf32>
    %25 = tpu.matmul %24, %22, %cst_11 {dimension_numbers = #tpu.dot_dimension_numbers<[1], [0], [0], [1], [0, 0, 1, 1], [], []>} : vector<4x12xbf16>, vector<12x286xbf16>, vector<4x286xf32> -> vector<4x286xf32>
    %26 = arith.addf %18, %25 : vector<4x286xf32>
    %27 = vector.extract_strided_slice %26 {offsets = [0, 0], sizes = [4, 16], strides = [1, 1]} : vector<4x286xf32> to vector<4x16xf32>
    %28 = vector.extract_strided_slice %26 {offsets = [0, 18], sizes = [4, 16], strides = [1, 1]} : vector<4x286xf32> to vector<4x16xf32>
    %29 = vector.extract_strided_slice %26 {offsets = [0, 36], sizes = [4, 16], strides = [1, 1]} : vector<4x286xf32> to vector<4x16xf32>
    %30 = vector.extract_strided_slice %26 {offsets = [0, 54], sizes = [4, 16], strides = [1, 1]} : vector<4x286xf32> to vector<4x16xf32>
    %31 = vector.extract_strided_slice %26 {offsets = [0, 72], sizes = [4, 16], strides = [1, 1]} : vector<4x286xf32> to vector<4x16xf32>
    %32 = vector.extract_strided_slice %26 {offsets = [0, 90], sizes = [4, 16], strides = [1, 1]} : vector<4x286xf32> to vector<4x16xf32>
    %33 = vector.extract_strided_slice %26 {offsets = [0, 108], sizes = [4, 16], strides = [1, 1]} : vector<4x286xf32> to vector<4x16xf32>
    %34 = vector.extract_strided_slice %26 {offsets = [0, 126], sizes = [4, 16], strides = [1, 1]} : vector<4x286xf32> to vector<4x16xf32>
    %35 = vector.extract_strided_slice %26 {offsets = [0, 144], sizes = [4, 16], strides = [1, 1]} : vector<4x286xf32> to vector<4x16xf32>
    %36 = vector.extract_strided_slice %26 {offsets = [0, 162], sizes = [4, 16], strides = [1, 1]} : vector<4x286xf32> to vector<4x16xf32>
    %37 = vector.extract_strided_slice %26 {offsets = [0, 180], sizes = [4, 16], strides = [1, 1]} : vector<4x286xf32> to vector<4x16xf32>
    %38 = vector.extract_strided_slice %26 {offsets = [0, 198], sizes = [4, 16], strides = [1, 1]} : vector<4x286xf32> to vector<4x16xf32>
    %39 = vector.extract_strided_slice %26 {offsets = [0, 216], sizes = [4, 16], strides = [1, 1]} : vector<4x286xf32> to vector<4x16xf32>
    %40 = vector.extract_strided_slice %26 {offsets = [0, 234], sizes = [4, 16], strides = [1, 1]} : vector<4x286xf32> to vector<4x16xf32>
    %41 = vector.extract_strided_slice %26 {offsets = [0, 252], sizes = [4, 16], strides = [1, 1]} : vector<4x286xf32> to vector<4x16xf32>
    %42 = vector.extract_strided_slice %26 {offsets = [0, 270], sizes = [4, 16], strides = [1, 1]} : vector<4x286xf32> to vector<4x16xf32>
    %43 = tpu.concatenate %27, %28, %29, %30, %31, %32, %33, %34, %35, %36, %37, %38, %39, %40, %41, %42 in 1 : vector<4x16xf32>, vector<4x16xf32>, vector<4x16xf32>, vector<4x16xf32>, vector<4x16xf32>, vector<4x16xf32>, vector<4x16xf32>, vector<4x16xf32>, vector<4x16xf32>, vector<4x16xf32>, vector<4x16xf32>, vector<4x16xf32>, vector<4x16xf32>, vector<4x16xf32>, vector<4x16xf32>, vector<4x16xf32> -> vector<4x256xf32>
    %44 = arith.truncf %43 : vector<4x256xf32> to vector<4x256xbf16>
    %c0_12 = arith.constant 0 : index
    %c0_13 = arith.constant 0 : index
    %c0_14 = arith.constant 0 : index
    %45 = vector.load %arg3[%c0_12, %c0_13, %c0_14] : memref<1x4x256xbf16, #tpu.memory_space<vmem>>, vector<1x4x256xbf16>
    %46 = vector.shape_cast %45 : vector<1x4x256xbf16> to vector<4x256xbf16>
    %47 = vector.shape_cast %44 : vector<4x256xbf16> to vector<1x4x256xbf16>
    tpu.vector_store %arg3[%c0_12, %c0_13, %c0_14], %47 {strides = array<i32>} : memref<1x4x256xbf16, #tpu.memory_space<vmem>>, vector<1x4x256xbf16>,
    %cst_15 = arith.constant dense<0.000000e+00> : vector<4xf32>
    %48 = vector.multi_reduction <add>, %43, %cst_15 [1] : vector<4x256xf32> to vector<4xf32>
    %49 = vector.shape_cast %48 : vector<4xf32> to vector<4x1xf32>
    %c0_16 = arith.constant 0 : index
    %c0_17 = arith.constant 0 : index
    %c0_18 = arith.constant 0 : index
    %50 = vector.load %arg4[%c0_16, %c0_17, %c0_18] : memref<1x4x1xf32, #tpu.memory_space<vmem>>, vector<1x4x1xf32>
    %51 = vector.shape_cast %50 : vector<1x4x1xf32> to vector<4x1xf32>
    %52 = vector.shape_cast %49 : vector<4x1xf32> to vector<1x4x1xf32>
    tpu.vector_store %arg4[%c0_16, %c0_17, %c0_18], %52 {strides = array<i32>} : memref<1x4x1xf32, #tpu.memory_space<vmem>>, vector<1x4x1xf32>,
    %53 = arith.mulf %43, %43 : vector<4x256xf32>
    %cst_19 = arith.constant dense<0.000000e+00> : vector<4xf32>
    %54 = vector.multi_reduction <add>, %53, %cst_19 [1] : vector<4x256xf32> to vector<4xf32>
    %55 = vector.shape_cast %54 : vector<4xf32> to vector<4x1xf32>
    %c0_20 = arith.constant 0 : index
    %c0_21 = arith.constant 0 : index
    %c0_22 = arith.constant 0 : index
    %56 = vector.load %arg5[%c0_20, %c0_21, %c0_22] : memref<1x4x1xf32, #tpu.memory_space<vmem>>, vector<1x4x1xf32>
    %57 = vector.shape_cast %56 : vector<1x4x1xf32> to vector<4x1xf32>
    %58 = vector.shape_cast %55 : vector<4x1xf32> to vector<1x4x1xf32>
    tpu.vector_store %arg5[%c0_20, %c0_21, %c0_22], %58 {strides = array<i32>} : memref<1x4x1xf32, #tpu.memory_space<vmem>>, vector<1x4x1xf32>,
    return
  }
  func.func @transform_0(%arg0: i32) -> (i32, i32, i32) {
    %c0_i32 = arith.constant 0 : i32
    %c0_i32_0 = arith.constant 0 : i32
    %c0_i32_1 = arith.constant 0 : i32
    return %arg0, %c0_i32, %c0_i32_0 : i32, i32, i32
  }
  func.func @transform_1(%arg0: i32) -> (i32, i32, i32) {
    %c0_i32 = arith.constant 0 : i32
    %c0_i32_0 = arith.constant 0 : i32
    %c0_i32_1 = arith.constant 0 : i32
    %c0_i32_2 = arith.constant 0 : i32
    return %c0_i32, %c0_i32_0, %c0_i32_1 : i32, i32, i32
  }
  func.func @transform_2(%arg0: i32) -> (i32, i32, i32) {
    %c0_i32 = arith.constant 0 : i32
    %c0_i32_0 = arith.constant 0 : i32
    %c0_i32_1 = arith.constant 0 : i32
    return %arg0, %c0_i32, %c0_i32_0 : i32, i32, i32
  }
  func.func @transform_3(%arg0: i32) -> (i32, i32, i32) {
    %c0_i32 = arith.constant 0 : i32
    %c0_i32_0 = arith.constant 0 : i32
    %c0_i32_1 = arith.constant 0 : i32
    return %arg0, %c0_i32, %c0_i32_0 : i32, i32, i32
  }
  func.func @transform_4(%arg0: i32) -> (i32, i32, i32) {
    %c0_i32 = arith.constant 0 : i32
    %c0_i32_0 = arith.constant 0 : i32
    %c0_i32_1 = arith.constant 0 : i32
    return %arg0, %c0_i32, %c0_i32_0 : i32, i32, i32
  }
}

module attributes {stable_mosaic.version = 11 : i64} {
  func.func @_bn_residual_kernel(%arg0: i32, %arg1: memref<1x4x256xbf16, #tpu.memory_space<vmem>>, %arg2: memref<1x4x256xf32, #tpu.memory_space<vmem>>, %arg3: memref<4x1xf32, #tpu.memory_space<vmem>>, %arg4: memref<4x1xf32, #tpu.memory_space<vmem>>, %arg5: memref<1x4x256xf32, #tpu.memory_space<vmem>>) attributes {dimension_semantics = [#tpu.dimension_semantics<parallel>], iteration_bounds = array<i64: 2>, scalar_prefetch = 0 : i64, scratch_operands = 0 : i64, tpu.core_type = #tpu.core_type<tc>, window_params = [{transform_indices = @transform_0, window_bounds = array<i64: 1, 4, 256>}, {transform_indices = @transform_1, window_bounds = array<i64: 1, 4, 256>}, {pipeline_mode = #tpu.pipeline_mode<synchronous>, transform_indices = @transform_2, window_bounds = array<i64: 4, 1>}, {pipeline_mode = #tpu.pipeline_mode<synchronous>, transform_indices = @transform_3, window_bounds = array<i64: 4, 1>}, {transform_indices = @transform_4, window_bounds = array<i64: 1, 4, 256>}]} {
    %c0 = arith.constant 0 : index
    %c0_0 = arith.constant 0 : index
    %c0_1 = arith.constant 0 : index
    %0 = vector.load %arg1[%c0, %c0_0, %c0_1] : memref<1x4x256xbf16, #tpu.memory_space<vmem>>, vector<1x4x256xbf16>
    %1 = vector.shape_cast %0 : vector<1x4x256xbf16> to vector<4x256xbf16>
    %2 = arith.extf %1 : vector<4x256xbf16> to vector<4x256xf32>
    %c0_2 = arith.constant 0 : index
    %c0_3 = arith.constant 0 : index
    %3 = vector.load %arg3[%c0_2, %c0_3] : memref<4x1xf32, #tpu.memory_space<vmem>>, vector<4x1xf32>
    %4 = vector.broadcast %3 : vector<4x1xf32> to vector<4x256xf32>
    %5 = arith.mulf %2, %4 : vector<4x256xf32>
    %c0_4 = arith.constant 0 : index
    %c0_5 = arith.constant 0 : index
    %6 = vector.load %arg4[%c0_4, %c0_5] : memref<4x1xf32, #tpu.memory_space<vmem>>, vector<4x1xf32>
    %7 = vector.broadcast %6 : vector<4x1xf32> to vector<4x256xf32>
    %8 = arith.addf %5, %7 : vector<4x256xf32>
    %c0_6 = arith.constant 0 : index
    %c0_7 = arith.constant 0 : index
    %c0_8 = arith.constant 0 : index
    %9 = vector.load %arg2[%c0_6, %c0_7, %c0_8] : memref<1x4x256xf32, #tpu.memory_space<vmem>>, vector<1x4x256xf32>
    %10 = vector.shape_cast %9 : vector<1x4x256xf32> to vector<4x256xf32>
    %11 = arith.addf %8, %10 : vector<4x256xf32>
    %c0_9 = arith.constant 0 : index
    %c0_10 = arith.constant 0 : index
    %c0_11 = arith.constant 0 : index
    %12 = vector.load %arg5[%c0_9, %c0_10, %c0_11] : memref<1x4x256xf32, #tpu.memory_space<vmem>>, vector<1x4x256xf32>
    %13 = vector.shape_cast %12 : vector<1x4x256xf32> to vector<4x256xf32>
    %14 = vector.shape_cast %11 : vector<4x256xf32> to vector<1x4x256xf32>
    tpu.vector_store %arg5[%c0_9, %c0_10, %c0_11], %14 {strides = array<i32>} : memref<1x4x256xf32, #tpu.memory_space<vmem>>, vector<1x4x256xf32>,
    return
  }
  func.func @transform_0(%arg0: i32) -> (i32, i32, i32) {
    %c0_i32 = arith.constant 0 : i32
    %c0_i32_0 = arith.constant 0 : i32
    %c0_i32_1 = arith.constant 0 : i32
    return %arg0, %c0_i32, %c0_i32_0 : i32, i32, i32
  }
  func.func @transform_1(%arg0: i32) -> (i32, i32, i32) {
    %c0_i32 = arith.constant 0 : i32
    %c0_i32_0 = arith.constant 0 : i32
    %c0_i32_1 = arith.constant 0 : i32
    return %arg0, %c0_i32, %c0_i32_0 : i32, i32, i32
  }
  func.func @transform_2(%arg0: i32) -> (i32, i32) {
    %c0_i32 = arith.constant 0 : i32
    %c0_i32_0 = arith.constant 0 : i32
    %c0_i32_1 = arith.constant 0 : i32
    return %c0_i32, %c0_i32_0 : i32, i32
  }
  func.func @transform_3(%arg0: i32) -> (i32, i32) {
    %c0_i32 = arith.constant 0 : i32
    %c0_i32_0 = arith.constant 0 : i32
    %c0_i32_1 = arith.constant 0 : i32
    return %c0_i32, %c0_i32_0 : i32, i32
  }
  func.func @transform_4(%arg0: i32) -> (i32, i32, i32) {
    %c0_i32 = arith.constant 0 : i32
    %c0_i32_0 = arith.constant 0 : i32
    %c0_i32_1 = arith.constant 0 : i32
    return %arg0, %c0_i32, %c0_i32_0 : i32, i32, i32
  }
}

</mosaic_0001>

<llo_original>
// kernel: dfem_block_forward.3
$region0: #{dfem_block_forward.3}
  #allocation0 [shape = 'u32[]', space=smem, size = 0x4, offset = 0x4, fixed_abs, tag = 'smem constant byte address 0x4 - core index']
  #allocation1 [shape = 'u32[144,128]{1,0:T(1,128)}', space=vmem, size = 0x12000, scoped, tag = 'internal scratch']
  %s0 = inlined_call_operand.vmem [shape: bf16[2,4,256], index: 0, kind: input, shape index: {}]
  %s1 = inlined_call_operand.vmem [shape: f32[2,4,256], index: 1, kind: input, shape index: {}]
  %s2 = inlined_call_operand.vmem [shape: f32[4,1], index: 2, kind: input, shape index: {}]
  %s3 = inlined_call_operand.vmem [shape: f32[4,1], index: 3, kind: input, shape index: {}]
  %s4 = inlined_call_operand.vmem [shape: f32[2,4,256], index: 4, kind: output, shape index: {}]
  %s5 = sld [smem:[#allocation0]]
  $region49: #{dfem_block_forward.3} parent=0
    _
  %s7 = ssub.s32 1, %s5
  %s8 = scalar_select 0, %s7, %s5
  loop: start=0, step=1, limit=4
  $region2: #{dfem_block_forward.3} parent=0 // loop_pre_header
    _
  $region3: #{dfem_block_forward.3} parent=0 // loop_header
    %s10 = sphi 0, %s14
    %p11 = scmp.ge.s32.totalorder %s10, 4
    %s20 = sphi 0, %s22
    %s23 = sphi 0, %s20
    %s24 = sphi 0, %s23
    %s40 = sphi 0, %s24
    %s46 = sphi 0, %s48
    %s49 = sphi 0, %s46
    %s50 = sphi 0, %s49
    %s66 = sphi 0, %s50
    %s70 = sphi 0, %s70
    %s72 = sphi 0, %s70
    %s73 = sphi 0, %s72
    %s87 = sphi 0, %s73
    %s91 = sphi 0, %s91
    %s93 = sphi 0, %s91
    %s94 = sphi 0, %s93
    %s108 = sphi 0, %s94
    %s114 = sphi 0, %s116
    %s117 = sphi 0, %s114
    %s118 = sphi 0, %s117
    %s134 = sphi 0, %s118
  $region4: #{dfem_block_forward.3} parent=0 // loop_header_branch
    %13 = sbr.rel (%p11) target = $region8
  $region5: #{dfem_block_forward.3} parent=0 // loop_body
    %s15 = ssub.s32 %s10, 1
    %s16 = ssub.s32 %s10, 2
    %s17 = sadd.s32 %s10, 1
    %s18 = ssub.s32 %s10, %s17
    %p19 = scmp.eq.s32.totalorder %s18, 0
    %s21 = sadd.s32 %s20, 1
    %s22 = scalar_select %p19, %s20, %s21
    %p25 = pneg %p19
    %p26 = scmp.eq.s32.totalorder %s10, 1
    %p27 = por %p25, %p26
    %p28 = scmp.ne.s32.totalorder %s20, %s23
    %p29 = scmp.eq.s32.totalorder %s10, 0
    %p30 = por %p28, %p29
    %p31 = scmp.ne.s32.totalorder %s20, %s23
    %p32 = scmp.eq.s32.totalorder %s15, 1
    %p33 = por %p31, %p32
    %p34 = scmp.ne.s32.totalorder %s23, %s24
    %p35 = scmp.eq.s32.totalorder %s15, 0
    %p36 = por %p34, %p35
    %p37 = scmp.ne.s32.totalorder %s23, %s24
    %p38 = scmp.eq.s32.totalorder %s16, 1
    %p39 = por %p37, %p38
    %p41 = scmp.ne.s32.totalorder %s24, %s40
    %p42 = scmp.eq.s32.totalorder %s16, 0
    %p43 = por %p41, %p42
    %s44 = ssub.s32 %s10, %s17
    %p45 = scmp.eq.s32.totalorder %s44, 0
    %s47 = sadd.s32 %s46, 1
    %s48 = scalar_select %p45, %s46, %s47
    %p51 = pneg %p45
    %p52 = scmp.eq.s32.totalorder %s10, 1
    %p53 = por %p51, %p52
    %p54 = scmp.ne.s32.totalorder %s46, %s49
    %p55 = scmp.eq.s32.totalorder %s10, 0
    %p56 = por %p54, %p55
    %p57 = scmp.ne.s32.totalorder %s46, %s49
    %p58 = scmp.eq.s32.totalorder %s15, 1
    %p59 = por %p57, %p58
    %p60 = scmp.ne.s32.totalorder %s49, %s50
    %p61 = scmp.eq.s32.totalorder %s15, 0
    %p62 = por %p60, %p61
    %p63 = scmp.ne.s32.totalorder %s49, %s50
    %p64 = scmp.eq.s32.totalorder %s16, 1
    %p65 = por %p63, %p64
    %p67 = scmp.ne.s32.totalorder %s50, %s66
    %p68 = scmp.eq.s32.totalorder %s16, 0
    %p69 = por %p67, %p68
    %s71 = sadd.s32 %s70, 1
    %p74 = scmp.eq.s32.totalorder %s10, 1
    %p75 = scmp.ne.s32.totalorder %s70, %s72
    %p76 = scmp.eq.s32.totalorder %s10, 0
    %p77 = por %p75, %p76
    %p78 = scmp.ne.s32.totalorder %s70, %s72
    %p79 = scmp.eq.s32.totalorder %s15, 1
    %p80 = por %p78, %p79
    %p81 = scmp.ne.s32.totalorder %s72, %s73
    %p82 = scmp.eq.s32.totalorder %s15, 0
    %p83 = por %p81, %p82
    %p84 = scmp.ne.s32.totalorder %s72, %s73
    %p85 = scmp.eq.s32.totalorder %s16, 1
    %p86 = por %p84, %p85
    %p88 = scmp.ne.s32.totalorder %s73, %s87
    %p89 = scmp.eq.s32.totalorder %s16, 0
    %p90 = por %p88, %p89
    %s92 = sadd.s32 %s91, 1
    %p95 = scmp.eq.s32.totalorder %s10, 1
    %p96 = scmp.ne.s32.totalorder %s91, %s93
    %p97 = scmp.eq.s32.totalorder %s10, 0
    %p98 = por %p96, %p97
    %p99 = scmp.ne.s32.totalorder %s91, %s93
    %p100 = scmp.eq.s32.totalorder %s15, 1
    %p101 = por %p99, %p100
    %p102 = scmp.ne.s32.totalorder %s93, %s94
    %p103 = scmp.eq.s32.totalorder %s15, 0
    %p104 = por %p102, %p103
    %p105 = scmp.ne.s32.totalorder %s93, %s94
    %p106 = scmp.eq.s32.totalorder %s16, 1
    %p107 = por %p105, %p106
    %p109 = scmp.ne.s32.totalorder %s94, %s108
    %p110 = scmp.eq.s32.totalorder %s16, 0
    %p111 = por %p109, %p110
    %s112 = ssub.s32 %s10, %s17
    %p113 = scmp.eq.s32.totalorder %s112, 0
    %s115 = sadd.s32 %s114, 1
    %s116 = scalar_select %p113, %s114, %s115
    %p119 = pneg %p113
    %p120 = scmp.eq.s32.totalorder %s10, 1
    %p121 = por %p119, %p120
    %p122 = scmp.ne.s32.totalorder %s114, %s117
    %p123 = scmp.eq.s32.totalorder %s10, 0
    %p124 = por %p122, %p123
    %p125 = scmp.ne.s32.totalorder %s114, %s117
    %p126 = scmp.eq.s32.totalorder %s15, 1
    %p127 = por %p125, %p126
    %p128 = scmp.ne.s32.totalorder %s117, %s118
    %p129 = scmp.eq.s32.totalorder %s15, 0
    %p130 = por %p128, %p129
    %p131 = scmp.ne.s32.totalorder %s117, %s118
    %p132 = scmp.eq.s32.totalorder %s16, 1
    %p133 = por %p131, %p132
    %p135 = scmp.ne.s32.totalorder %s118, %s134
    %p136 = scmp.eq.s32.totalorder %s16, 0
    %p137 = por %p135, %p136
    %p138 = scmp.le.s32.totalorder 1, %s10
    %p139 = scmp.lt.s32.totalorder %s10, 3
    %p140 = pnand %p138, %p139
    %p141 = pneg %p140
    // Predicated region
    $region9: #{dfem_block_forward.3} parent=5 // pred_check
      _
    $region10: #{dfem_block_forward.3} parent=5 // pred_check_branch
      %143 = sbr.rel (%p140) target = $region12
    $region11: #{dfem_block_forward.3} parent=5 // pred_region
      %s144 = ssub.s32 %s10, 1
      // Predicated region
      $region13: #{dfem_block_forward.3} parent=11 // pred_check
        %p145 = pneg %p83
      $region14: #{dfem_block_forward.3} parent=11 // pred_check_branch
        %147 = sbr.rel (%p145) target = $region16
      $region15: #{dfem_block_forward.3} parent=11 // pred_region
        _
      $region16: #{dfem_block_forward.3} parent=11 // pred_fallthru
        _
      // Predicated region
      $region17: #{dfem_block_forward.3} parent=11 // pred_check
        %p148 = pneg %p104
      $region18: #{dfem_block_forward.3} parent=11 // pred_check_branch
        %150 = sbr.rel (%p148) target = $region20
      $region19: #{dfem_block_forward.3} parent=11 // pred_region
        _
      $region20: #{dfem_block_forward.3} parent=11 // pred_fallthru
        _
    $region12: #{dfem_block_forward.3} parent=5 // pred_fallthru
      _
    %p151 = scmp.lt.s32.totalorder %s10, 2
    // Predicated region
    $region21: #{dfem_block_forward.3} parent=5 // pred_check
      %p152 = pneg %p151
    $region22: #{dfem_block_forward.3} parent=5 // pred_check_branch
      %154 = sbr.rel (%p152) target = $region24
    $region23: #{dfem_block_forward.3} parent=5 // pred_region
      // Predicated region
      $region25: #{dfem_block_forward.3} parent=23 // pred_check
        %p155 = pneg %p30
      $region26: #{dfem_block_forward.3} parent=23 // pred_check_branch
        %157 = sbr.rel (%p155) target = $region28
      $region27: #{dfem_block_forward.3} parent=23 // pred_region
        %p158 = scmp.lt.s32.totalorder %s10, 1
        %s159 = scalar_select %p158, %s10, 1
        %s160 = smul.addr %s159, 2
        %s161 = smul.addr %s160, 2
        %s162 = scalar_lea.vmem %s0, %s161
      $region28: #{dfem_block_forward.3} parent=23 // pred_fallthru
        _
      // Predicated region
      $region29: #{dfem_block_forward.3} parent=23 // pred_check
        %p163 = pneg %p56
      $region30: #{dfem_block_forward.3} parent=23 // pred_check_branch
        %165 = sbr.rel (%p163) target = $region32
      $region31: #{dfem_block_forward.3} parent=23 // pred_region
        %p166 = scmp.lt.s32.totalorder %s10, 1
        %s167 = scalar_select %p166, %s10, 1
        %s168 = smul.addr %s167, 2
        %s169 = smul.addr %s168, 4
        %s170 = scalar_lea.vmem %s1, %s169
      $region32: #{dfem_block_forward.3} parent=23 // pred_fallthru
        _
    $region24: #{dfem_block_forward.3} parent=5 // pred_fallthru
      _
    %p171 = scmp.le.s32.totalorder 1, %s10
    %p172 = scmp.lt.s32.totalorder %s10, 3
    %p173 = pnand %p171, %p172
    %p174 = pneg %p173
    // Predicated region
    $region33: #{dfem_block_forward.3} parent=5 // pred_check
      _
    $region34: #{dfem_block_forward.3} parent=5 // pred_check_branch
      %176 = sbr.rel (%p173) target = $region36
    $region35: #{dfem_block_forward.3} parent=5 // pred_region
      %s177 = ssub.s32 %s10, 1
      %p178 = scmp.lt.s32.totalorder %s15, 1
      %s179 = scalar_select %p178, %s15, 1
      %s180 = smul.addr %s179, 2
      %s181 = smul.addr %s180, 2
      %s182 = scalar_lea.vmem %s0, %s181
      %p183 = pneg %p36
      %p184 = pneg %p33
      %p185 = scmp.lt.s32.totalorder %s15, 1
      %s186 = scalar_select %p185, %s15, 1
      %s187 = smul.addr %s186, 2
      %s188 = smul.addr %s187, 4
      %s189 = scalar_lea.vmem %s1, %s188
      %p190 = pneg %p62
      %p191 = pneg %p59
      %p192 = pneg %p83
      %p193 = pneg %p80
      %p194 = pneg %p104
      %p195 = pneg %p101
      %p196 = pneg %p130
      %p197 = pneg %p127
      %p198 = scmp.lt.s32.totalorder %s15, 1
      %s199 = scalar_select %p198, %s15, 1
      %s200 = smul.addr %s199, 2
      %s201 = smul.addr %s200, 4
      %s202 = scalar_lea.vmem %s4, %s201
      %p203 = scmp.lt.s32.totalorder %s15, 1
      %s204 = scalar_select %p203, %s15, 1
      %s205 = smul.addr %s204, 2
      %s206 = smul.addr %s205, 2
      %s207 = scalar_lea.vmem %s0, %s206
      %p208 = scmp.lt.s32.totalorder %s15, 1
      %s209 = scalar_select %p208, %s15, 1
      %s210 = smul.addr %s209, 2
      %s211 = smul.addr %s210, 4
      %s212 = scalar_lea.vmem %s1, %s211
      %p213 = scmp.lt.s32.totalorder %s15, 1
      %s214 = scalar_select %p213, %s15, 1
      %s215 = smul.addr %s214, 2
      %s216 = smul.addr %s215, 4
      %s217 = scalar_lea.vmem %s4, %s216
      %v218 = vld [vmem:[%s207] sm:$0xf]
      %v219 = vunpack.c.l.bf16 %v218
      %v220 = vld [vmem:[%s2] sm:$0xf]
      %222 = vset.pattern.permute.xlu0 0
      %223 = vperm.xlu0 %222, %v220
      %v224 = vpop.permute.xlu0 %223
      %v226 = vunpack.c.l.s4 839922192
      %v227 = vunpack.c.0.s8 %v226
      %v228 = vlaneseq
      %v229 = vshrl.u32 %v228, 7
      %v230 = vsub.s32 %v227, %v229
      %v231 = vrot.slane %v224, %v230
      %v233 = vmul.f32 %v219, %v231
      %v234 = vld [vmem:[%s3] sm:$0xf]
      %236 = vset.pattern.permute.xlu0 0
      %237 = vperm.xlu0 %236, %v234
      %v238 = vpop.permute.xlu0 %237
      %v240 = vunpack.c.l.s4 839922192
      %v241 = vunpack.c.0.s8 %v240
      %v242 = vlaneseq
      %v243 = vshrl.u32 %v242, 7
      %v244 = vsub.s32 %v241, %v243
      %v245 = vrot.slane %v238, %v244
      %v247 = vadd.f32 %v233, %v245
      %v248 = vld [vmem:[%s212] sm:$0xff]
      %v249 = vadd.f32 %v247, %v248
      %250 = vst [vmem:[%s217] sm:$0xff] %v249
      %p251 = scmp.lt.s32.totalorder %s15, 1
      %s252 = scalar_select %p251, %s15, 1
      %s253 = smul.addr %s252, 2
      %s254 = smul.addr %s253, 4
      %s255 = scalar_lea.vmem %s4, %s254
      // Predicated region
      $region37: #{dfem_block_forward.3} parent=35 // pred_check
        %p256 = pneg %p127
      $region38: #{dfem_block_forward.3} parent=35 // pred_check_branch
        %258 = sbr.rel (%p256) target = $region40
      $region39: #{dfem_block_forward.3} parent=35 // pred_region
        _
      $region40: #{dfem_block_forward.3} parent=35 // pred_fallthru
        _
    $region36: #{dfem_block_forward.3} parent=5 // pred_fallthru
      _
    %p259 = scmp.le.s32.totalorder 2, %s10
    // Predicated region
    $region41: #{dfem_block_forward.3} parent=5 // pred_check
      %p260 = pneg %p259
    $region42: #{dfem_block_forward.3} parent=5 // pred_check_branch
      %262 = sbr.rel (%p260) target = $region44
    $region43: #{dfem_block_forward.3} parent=5 // pred_region
      %s263 = ssub.s32 %s10, 2
      // Predicated region
      $region45: #{dfem_block_forward.3} parent=43 // pred_check
        %p264 = pneg %p133
      $region46: #{dfem_block_forward.3} parent=43 // pred_check_branch
        %266 = sbr.rel (%p264) target = $region48
      $region47: #{dfem_block_forward.3} parent=43 // pred_region
        %p267 = scmp.lt.s32.totalorder %s16, 1
        %s268 = scalar_select %p267, %s16, 1
        %s269 = smul.addr %s268, 2
        %s270 = smul.addr %s269, 4
        %s271 = scalar_lea.vmem %s4, %s270
      $region48: #{dfem_block_forward.3} parent=43 // pred_fallthru
        _
    $region44: #{dfem_block_forward.3} parent=5 // pred_fallthru
      _
  $region6: #{dfem_block_forward.3} parent=0 // loop_footer
    %s14 = sadd.s32 1, %s10
  $region7: #{dfem_block_forward.3} parent=0 // loop_footer_branch
    %9 = sbr.rel target = $region3
  $region8: #{dfem_block_forward.3} parent=0 // loop_exit
    _

// kernel: dfem_block_forward.2
$region0: #{dfem_block_forward.2}
  #allocation0 [shape = 'u32[]', space=smem, size = 0x4, offset = 0x4, fixed_abs, tag = 'smem constant byte address 0x4 - core index']
  #allocation1 [shape = 'u32[144,128]{1,0:T(1,128)}', space=vmem, size = 0x12000, scoped, tag = 'internal scratch']
  %s0 = inlined_call_operand.vmem [shape: bf16[2,4,324], index: 0, kind: input, shape index: {}]
  %s1 = inlined_call_operand.vmem [shape: bf16[3,4,12], index: 1, kind: input, shape index: {}]
  %s2 = inlined_call_operand.vmem [shape: bf16[2,4,256], index: 2, kind: output, shape index: {0}]
  %s3 = inlined_call_operand.vmem [shape: f32[2,4,1], index: 3, kind: output, shape index: {1}]
  %s4 = inlined_call_operand.vmem [shape: f32[2,4,1], index: 4, kind: output, shape index: {2}]
  %5 = xla_tuple %s2, %s3, %s4
  %s6 = sld [smem:[#allocation0]]
  $region57: #{dfem_block_forward.2} parent=0
    _
  %s8 = ssub.s32 1, %s6
  %s9 = scalar_select 0, %s8, %s6
  loop: start=0, step=1, limit=4
  $region2: #{dfem_block_forward.2} parent=0 // loop_pre_header
    _
  $region3: #{dfem_block_forward.2} parent=0 // loop_header
    %s11 = sphi 0, %s15
    %p12 = scmp.ge.s32.totalorder %s11, 4
    %s21 = sphi 0, %s23
    %s24 = sphi 0, %s21
    %s25 = sphi 0, %s24
    %s41 = sphi 0, %s25
    %s45 = sphi 0, %s45
    %s47 = sphi 0, %s45
    %s48 = sphi 0, %s47
    %s62 = sphi 0, %s48
    %s68 = sphi 0, %s70
    %s71 = sphi 0, %s68
    %s72 = sphi 0, %s71
    %s88 = sphi 0, %s72
    %s94 = sphi 0, %s96
    %s97 = sphi 0, %s94
    %s98 = sphi 0, %s97
    %s114 = sphi 0, %s98
    %s120 = sphi 0, %s122
    %s123 = sphi 0, %s120
    %s124 = sphi 0, %s123
    %s140 = sphi 0, %s124
  $region4: #{dfem_block_forward.2} parent=0 // loop_header_branch
    %14 = sbr.rel (%p12) target = $region8
  $region5: #{dfem_block_forward.2} parent=0 // loop_body
    %s16 = ssub.s32 %s11, 1
    %s17 = ssub.s32 %s11, 2
    %s18 = sadd.s32 %s11, 1
    %s19 = ssub.s32 %s11, %s18
    %p20 = scmp.eq.s32.totalorder %s19, 0
    %s22 = sadd.s32 %s21, 1
    %s23 = scalar_select %p20, %s21, %s22
    %p26 = pneg %p20
    %p27 = scmp.eq.s32.totalorder %s11, 1
    %p28 = por %p26, %p27
    %p29 = scmp.ne.s32.totalorder %s21, %s24
    %p30 = scmp.eq.s32.totalorder %s11, 0
    %p31 = por %p29, %p30
    %p32 = scmp.ne.s32.totalorder %s21, %s24
    %p33 = scmp.eq.s32.totalorder %s16, 1
    %p34 = por %p32, %p33
    %p35 = scmp.ne.s32.totalorder %s24, %s25
    %p36 = scmp.eq.s32.totalorder %s16, 0
    %p37 = por %p35, %p36
    %p38 = scmp.ne.s32.totalorder %s24, %s25
    %p39 = scmp.eq.s32.totalorder %s17, 1
    %p40 = por %p38, %p39
    %p42 = scmp.ne.s32.totalorder %s25, %s41
    %p43 = scmp.eq.s32.totalorder %s17, 0
    %p44 = por %p42, %p43
    %s46 = sadd.s32 %s45, 1
    %p49 = scmp.eq.s32.totalorder %s11, 1
    %p50 = scmp.ne.s32.totalorder %s45, %s47
    %p51 = scmp.eq.s32.totalorder %s11, 0
    %p52 = por %p50, %p51
    %p53 = scmp.ne.s32.totalorder %s45, %s47
    %p54 = scmp.eq.s32.totalorder %s16, 1
    %p55 = por %p53, %p54
    %p56 = scmp.ne.s32.totalorder %s47, %s48
    %p57 = scmp.eq.s32.totalorder %s16, 0
    %p58 = por %p56, %p57
    %p59 = scmp.ne.s32.totalorder %s47, %s48
    %p60 = scmp.eq.s32.totalorder %s17, 1
    %p61 = por %p59, %p60
    %p63 = scmp.ne.s32.totalorder %s48, %s62
    %p64 = scmp.eq.s32.totalorder %s17, 0
    %p65 = por %p63, %p64
    %s66 = ssub.s32 %s11, %s18
    %p67 = scmp.eq.s32.totalorder %s66, 0
    %s69 = sadd.s32 %s68, 1
    %s70 = scalar_select %p67, %s68, %s69
    %p73 = pneg %p67
    %p74 = scmp.eq.s32.totalorder %s11, 1
    %p75 = por %p73, %p74
    %p76 = scmp.ne.s32.totalorder %s68, %s71
    %p77 = scmp.eq.s32.totalorder %s11, 0
    %p78 = por %p76, %p77
    %p79 = scmp.ne.s32.totalorder %s68, %s71
    %p80 = scmp.eq.s32.totalorder %s16, 1
    %p81 = por %p79, %p80
    %p82 = scmp.ne.s32.totalorder %s71, %s72
    %p83 = scmp.eq.s32.totalorder %s16, 0
    %p84 = por %p82, %p83
    %p85 = scmp.ne.s32.totalorder %s71, %s72
    %p86 = scmp.eq.s32.totalorder %s17, 1
    %p87 = por %p85, %p86
    %p89 = scmp.ne.s32.totalorder %s72, %s88
    %p90 = scmp.eq.s32.totalorder %s17, 0
    %p91 = por %p89, %p90
    %s92 = ssub.s32 %s11, %s18
    %p93 = scmp.eq.s32.totalorder %s92, 0
    %s95 = sadd.s32 %s94, 1
    %s96 = scalar_select %p93, %s94, %s95
    %p99 = pneg %p93
    %p100 = scmp.eq.s32.totalorder %s11, 1
    %p101 = por %p99, %p100
    %p102 = scmp.ne.s32.totalorder %s94, %s97
    %p103 = scmp.eq.s32.totalorder %s11, 0
    %p104 = por %p102, %p103
    %p105 = scmp.ne.s32.totalorder %s94, %s97
    %p106 = scmp.eq.s32.totalorder %s16, 1
    %p107 = por %p105, %p106
    %p108 = scmp.ne.s32.totalorder %s97, %s98
    %p109 = scmp.eq.s32.totalorder %s16, 0
    %p110 = por %p108, %p109
    %p111 = scmp.ne.s32.totalorder %s97, %s98
    %p112 = scmp.eq.s32.totalorder %s17, 1
    %p113 = por %p111, %p112
    %p115 = scmp.ne.s32.totalorder %s98, %s114
    %p116 = scmp.eq.s32.totalorder %s17, 0
    %p117 = por %p115, %p116
    %s118 = ssub.s32 %s11, %s18
    %p119 = scmp.eq.s32.totalorder %s118, 0
    %s121 = sadd.s32 %s120, 1
    %s122 = scalar_select %p119, %s120, %s121
    %p125 = pneg %p119
    %p126 = scmp.eq.s32.totalorder %s11, 1
    %p127 = por %p125, %p126
    %p128 = scmp.ne.s32.totalorder %s120, %s123
    %p129 = scmp.eq.s32.totalorder %s11, 0
    %p130 = por %p128, %p129
    %p131 = scmp.ne.s32.totalorder %s120, %s123
    %p132 = scmp.eq.s32.totalorder %s16, 1
    %p133 = por %p131, %p132
    %p134 = scmp.ne.s32.totalorder %s123, %s124
    %p135 = scmp.eq.s32.totalorder %s16, 0
    %p136 = por %p134, %p135
    %p137 = scmp.ne.s32.totalorder %s123, %s124
    %p138 = scmp.eq.s32.totalorder %s17, 1
    %p139 = por %p137, %p138
    %p141 = scmp.ne.s32.totalorder %s124, %s140
    %p142 = scmp.eq.s32.totalorder %s17, 0
    %p143 = por %p141, %p142
    %p144 = scmp.le.s32.totalorder 1, %s11
    %p145 = scmp.lt.s32.totalorder %s11, 3
    %p146 = pnand %p144, %p145
    %p147 = pneg %p146
    // Predicated region
    $region9: #{dfem_block_forward.2} parent=5 // pred_check
      _
    $region10: #{dfem_block_forward.2} parent=5 // pred_check_branch
      %149 = sbr.rel (%p146) target = $region12
    $region11: #{dfem_block_forward.2} parent=5 // pred_region
      %s150 = ssub.s32 %s11, 1
      // Predicated region
      $region13: #{dfem_block_forward.2} parent=11 // pred_check
        %p151 = pneg %p58
      $region14: #{dfem_block_forward.2} parent=11 // pred_check_branch
        %153 = sbr.rel (%p151) target = $region16
      $region15: #{dfem_block_forward.2} parent=11 // pred_region
        _
      $region16: #{dfem_block_forward.2} parent=11 // pred_fallthru
        _
    $region12: #{dfem_block_forward.2} parent=5 // pred_fallthru
      _
    %p154 = scmp.lt.s32.totalorder %s11, 2
    // Predicated region
    $region17: #{dfem_block_forward.2} parent=5 // pred_check
      %p155 = pneg %p154
    $region18: #{dfem_block_forward.2} parent=5 // pred_check_branch
      %157 = sbr.rel (%p155) target = $region20
    $region19: #{dfem_block_forward.2} parent=5 // pred_region
      // Predicated region
      $region21: #{dfem_block_forward.2} parent=19 // pred_check
        %p158 = pneg %p31
      $region22: #{dfem_block_forward.2} parent=19 // pred_check_branch
        %160 = sbr.rel (%p158) target = $region24
      $region23: #{dfem_block_forward.2} parent=19 // pred_region
        %p161 = scmp.lt.s32.totalorder %s11, 1
        %s162 = scalar_select %p161, %s11, 1
        %s163 = smul.addr %s162, 3
        %s164 = smul.addr %s163, 2
        %s165 = scalar_lea.vmem %s0, %s164
      $region24: #{dfem_block_forward.2} parent=19 // pred_fallthru
        _
    $region20: #{dfem_block_forward.2} parent=5 // pred_fallthru
      _
    %p166 = scmp.le.s32.totalorder 1, %s11
    %p167 = scmp.lt.s32.totalorder %s11, 3
    %p168 = pnand %p166, %p167
    %p169 = pneg %p168
    // Predicated region
    $region25: #{dfem_block_forward.2} parent=5 // pred_check
      _
    $region26: #{dfem_block_forward.2} parent=5 // pred_check_branch
      %171 = sbr.rel (%p168) target = $region28
    $region27: #{dfem_block_forward.2} parent=5 // pred_region
      %s172 = ssub.s32 %s11, 1
      %p173 = scmp.lt.s32.totalorder %s16, 1
      %s174 = scalar_select %p173, %s16, 1
      %s175 = smul.addr %s174, 3
      %s176 = smul.addr %s175, 2
      %s177 = scalar_lea.vmem %s0, %s176
      %p178 = pneg %p37
      %p179 = pneg %p34
      %p180 = pneg %p58
      %p181 = pneg %p55
      %p182 = pneg %p84
      %p183 = pneg %p81
      %p184 = scmp.lt.s32.totalorder %s16, 1
      %s185 = scalar_select %p184, %s16, 1
      %s186 = smul.addr %s185, 2
      %s187 = smul.addr %s186, 2
      %s188 = scalar_lea.vmem %s2, %s187
      %p189 = pneg %p110
      %p190 = pneg %p107
      %p191 = scmp.lt.s32.totalorder %s16, 1
      %s192 = scalar_select %p191, %s16, 1
      %s193 = smul.addr %s192, 4
      %s194 = scalar_lea.vmem %s3, %s193
      %p195 = pneg %p136
      %p196 = pneg %p133
      %p197 = scmp.lt.s32.totalorder %s16, 1
      %s198 = scalar_select %p197, %s16, 1
      %s199 = smul.addr %s198, 4
      %s200 = scalar_lea.vmem %s4, %s199
      %p201 = scmp.lt.s32.totalorder %s16, 1
      %s202 = scalar_select %p201, %s16, 1
      %s203 = smul.addr %s202, 3
      %s204 = smul.addr %s203, 2
      %s205 = scalar_lea.vmem %s0, %s204
      %p206 = scmp.lt.s32.totalorder %s16, 1
      %s207 = scalar_select %p206, %s16, 1
      %s208 = smul.addr %s207, 2
      %s209 = smul.addr %s208, 2
      %s210 = scalar_lea.vmem %s2, %s209
      %p211 = scmp.lt.s32.totalorder %s16, 1
      %s212 = scalar_select %p211, %s16, 1
      %s213 = smul.addr %s212, 4
      %s214 = scalar_lea.vmem %s3, %s213
      %p215 = scmp.lt.s32.totalorder %s16, 1
      %s216 = scalar_select %p215, %s16, 1
      %s217 = smul.addr %s216, 4
      %s218 = scalar_lea.vmem %s4, %s217
      %v220 = vld [vmem:[%s205] sm:$0x3f]
      %v222 = vcombine.high %v220, %v220
      %v224 = vunpack.c.l.s4 1983009808
      %v225 = vunpack.c.0.s8 %v224
      %v226 = vlaneseq
      %v227 = vshrl.u32 %v226, 7
      %v228 = vsub.s32 %v225, %v227
      %v229 = vrot.slane %v220, %v228
      %v231 = vunpack.c.l.s4 1983009808
      %v232 = vunpack.c.0.s8 %v231
      %v233 = vlaneseq
      %v234 = vshrl.u32 %v233, 7
      %v235 = vsub.s32 %v232, %v234
      %v236 = vrot.slane %v222, %v235
      %v237 = vcombine.high %v229, %v229
      %v238 = vcombine.low %v220, %v220
      %v240 = vunpack.c.l.s4 1983009808
      %v241 = vunpack.c.0.s8 %v240
      %v242 = vlaneseq
      %v243 = vshrl.u32 %v242, 7
      %v244 = vsub.s32 %v241, %v243
      %v245 = vrot.slane %v238, %v244
      %v246 = vcombine.high %v245, %v245
      %247 = vrot.lane.b32.xlu0 %v245, 127
      %v248 = vpop.permute.xlu0 %247
      %249 = vrot.lane.b32.xlu0 %v246, 127
      %v250 = vpop.permute.xlu0 %249
      %251 = vrot.lane.b32.xlu0 %v229, 127
      %v252 = vpop.permute.xlu0 %251
      %vm253 = vcmask 1039360
      %v254 = vsel %vm253, %v248, %v250
      %v255 = vsel %vm253, %v250, %v252
      %v256 = vcombine.low %v229, %v229
      %v257 = vcombine.low %v236, %v236
      %258 = vrot.lane.b32.xlu0 %v256, 126
      %v259 = vpop.permute.xlu0 %258
      %260 = vrot.lane.b32.xlu0 %v229, 126
      %v261 = vpop.permute.xlu0 %260
      %262 = vrot.lane.b32.xlu0 %v257, 126
      %v263 = vpop.permute.xlu0 %262
      %vm264 = vcmask 1031168
      %v265 = vsel %vm264, %v259, %v261
      %v266 = vsel %vm264, %v261, %v263
      %vm267 = vcmask 1041408
      %v270 = vsel %vm267, %v229, %v254
      %v273 = vsel %vm267, %v237, %v255
      %v276 = vsel %vm267, %v236, %v252
      %vm277 = vcmask 1043456
      %v279 = vsel %vm277, %v270, %v265
      %v281 = vsel %vm277, %v273, %v266
      %v283 = vsel %vm277, %v276, %v263
      %v284 = vld [vmem:[%s1] sm:$0x3]
      %s285 = scalar_lea.vmem %s1, 2
      %v286 = vld [vmem:[%s285] sm:$0x3]
      %290 = vrot.lane.b32.xlu0 %v279, 110
      %v291 = vpop.permute.xlu0 %290
      %292 = vrot.lane.b32.xlu0 %v281, 110
      %v293 = vpop.permute.xlu0 %292
      %294 = vrot.lane.b32.xlu0 %v283, 110
      %v295 = vpop.permute.xlu0 %294
      %vm296 = vcmask 900096
      %v297 = vsel %vm296, %v291, %v293
      %v298 = vsel %vm296, %v293, %v295
      %vm299 = vcmask 97280
      %v301 = vsel %vm299, %v286, 0
      %vm303 = vcmask 1045504
      %v305 = vsel %vm303, %v297, 0
      %v308 = vsel %vm303, %v298, 0
      %v311 = vsel %vm303, %v295, 0
      %313 = vmatprep.subr.bf16.mxu0 %v308
      %314 = vmatpush1.bf16.msra.mxu0 %v305
      %315 = vmatprep.subr.bf16.mxu0 0
      %316 = vmatpush1.bf16.msra.mxu0 0
      %317 = vmatprep.subr.bf16.mxu0 0
      %318 = vmatpush1.bf16.msra.mxu0 0
      %319 = vmatprep.subr.bf16.mxu0 0
      %320 = vmatpush1.bf16.msra.mxu0 0
      %321 = vmatprep.subr.bf16.mxu0 0
      %322 = vmatpush1.bf16.msra.mxu0 0
      %323 = vmatprep.subr.bf16.mxu0 0
      %324 = vmatpush1.bf16.msra.mxu0 0
      %325 = vmatprep.subr.bf16.mxu0 0
      %326 = vmatpush1.bf16.msra.mxu0 0
      %327 = vmatprep.subr.bf16.mxu0 0
      %328 = vmatpush1.bf16.msra.mxu0 0
      %329 = vmatprep.subr.bf16.mxu0 0
      %330 = vmatpush1.bf16.msra.mxu0 0
      %331 = vmatprep.subr.bf16.mxu0 0
      %332 = vmatpush1.bf16.msra.mxu0 0
      %333 = vmatprep.subr.bf16.mxu0 0
      %334 = vmatpush1.bf16.msra.mxu0 0
      %335 = vmatprep.subr.bf16.mxu0 0
      %336 = vmatpush1.bf16.msra.mxu0 0
      %337 = vmatprep.subr.bf16.mxu0 0
      %338 = vmatpush1.bf16.msra.mxu0 0
      %339 = vmatprep.subr.bf16.mxu0 0
      %340 = vmatpush1.bf16.msra.mxu0 0
      %341 = vmatprep.subr.bf16.mxu0 0
      %342 = vmatpush1.bf16.msra.mxu0 0
      %343 = vmatprep.subr.bf16.mxu0 0
      %344 = vmatpush1.bf16.msra.mxu0 0
      %345 = vmatprep.mubr.bf16.mxu0 0
      %346 = vmatmul.mubr.bf16.gmra.mrb[0].mxu0 %v301
      %v347 = vpop.f32.mrb[0].mxu0
      %v348 = vadd.f32 0.0, %v347
      %v349 = vpop.f32.mrb[0].mxu0
      %v350 = vadd.f32 0.0, %v349
      %v351 = vpop.f32.mrb[0].mxu0
      %v352 = vpop.f32.mrb[0].mxu0
      %353 = vdwg.mxu0
      %354 = vmatprep.subr.bf16.mxu0 0
      %355 = vmatpush1.bf16.msra.mxu0 %v311
      %356 = vmatprep.subr.bf16.mxu0 0
      %357 = vmatpush1.bf16.msra.mxu0 0
      %358 = vmatprep.subr.bf16.mxu0 0
      %359 = vmatpush1.bf16.msra.mxu0 0
      %360 = vmatprep.subr.bf16.mxu0 0
      %361 = vmatpush1.bf16.msra.mxu0 0
      %362 = vmatprep.subr.bf16.mxu0 0
      %363 = vmatpush1.bf16.msra.mxu0 0
      %364 = vmatprep.subr.bf16.mxu0 0
      %365 = vmatpush1.bf16.msra.mxu0 0
      %366 = vmatprep.subr.bf16.mxu0 0
      %367 = vmatpush1.bf16.msra.mxu0 0
      %368 = vmatprep.subr.bf16.mxu0 0
      %369 = vmatpush1.bf16.msra.mxu0 0
      %370 = vmatprep.subr.bf16.mxu0 0
      %371 = vmatpush1.bf16.msra.mxu0 0
      %372 = vmatprep.subr.bf16.mxu0 0
      %373 = vmatpush1.bf16.msra.mxu0 0
      %374 = vmatprep.subr.bf16.mxu0 0
      %375 = vmatpush1.bf16.msra.mxu0 0
      %376 = vmatprep.subr.bf16.mxu0 0
      %377 = vmatpush1.bf16.msra.mxu0 0
      %378 = vmatprep.subr.bf16.mxu0 0
      %379 = vmatpush1.bf16.msra.mxu0 0
      %380 = vmatprep.subr.bf16.mxu0 0
      %381 = vmatpush1.bf16.msra.mxu0 0
      %382 = vmatprep.subr.bf16.mxu0 0
      %383 = vmatpush1.bf16.msra.mxu0 0
      %384 = vmatprep.subr.bf16.mxu0 0
      %385 = vmatpush1.bf16.msra.mxu0 0
      %386 = vmatprep.mubr.bf16.mxu0 0
      %387 = vmatmul.mubr.bf16.gmra.mrb[0].mxu0 %v301
      %v388 = vpop.f32.mrb[0].mxu0
      %v389 = vadd.f32 0.0, %v388
      %v390 = vpop.f32.mrb[0].mxu0
      %v391 = vpop.f32.mrb[0].mxu0
      %v392 = vpop.f32.mrb[0].mxu0
      %393 = vdwg.mxu0
      %v395 = vsel %vm299, %v284, 0
      %v397 = vsel %vm303, %v279, 0
      %v399 = vsel %vm303, %v281, 0
      %v401 = vsel %vm303, %v283, 0
      %403 = vmatprep.subr.bf16.mxu0 %v399
      %404 = vmatpush1.bf16.msra.mxu0 %v397
      %405 = vmatprep.subr.bf16.mxu0 0
      %406 = vmatpush1.bf16.msra.mxu0 0
      %407 = vmatprep.subr.bf16.mxu0 0
      %408 = vmatpush1.bf16.msra.mxu0 0
      %409 = vmatprep.subr.bf16.mxu0 0
      %410 = vmatpush1.bf16.msra.mxu0 0
      %411 = vmatprep.subr.bf16.mxu0 0
      %412 = vmatpush1.bf16.msra.mxu0 0
      %413 = vmatprep.subr.bf16.mxu0 0
      %414 = vmatpush1.bf16.msra.mxu0 0
      %415 = vmatprep.subr.bf16.mxu0 0
      %416 = vmatpush1.bf16.msra.mxu0 0
      %417 = vmatprep.subr.bf16.mxu0 0
      %418 = vmatpush1.bf16.msra.mxu0 0
      %419 = vmatprep.subr.bf16.mxu0 0
      %420 = vmatpush1.bf16.msra.mxu0 0
      %421 = vmatprep.subr.bf16.mxu0 0
      %422 = vmatpush1.bf16.msra.mxu0 0
      %423 = vmatprep.subr.bf16.mxu0 0
      %424 = vmatpush1.bf16.msra.mxu0 0
      %425 = vmatprep.subr.bf16.mxu0 0
      %426 = vmatpush1.bf16.msra.mxu0 0
      %427 = vmatprep.subr.bf16.mxu0 0
      %428 = vmatpush1.bf16.msra.mxu0 0
      %429 = vmatprep.subr.bf16.mxu0 0
      %430 = vmatpush1.bf16.msra.mxu0 0
      %431 = vmatprep.subr.bf16.mxu0 0
      %432 = vmatpush1.bf16.msra.mxu0 0
      %433 = vmatprep.subr.bf16.mxu0 0
      %434 = vmatpush1.bf16.msra.mxu0 0
      %435 = vmatprep.mubr.bf16.mxu0 0
      %436 = vmatmul.mubr.bf16.gmra.mrb[0].mxu0 %v395
      %v437 = vpop.f32.mrb[0].mxu0
      %v438 = vadd.f32 %v348, %v437
      %v439 = vpop.f32.mrb[0].mxu0
      %v440 = vadd.f32 %v350, %v439
      %v441 = vpop.f32.mrb[0].mxu0
      %v442 = vpop.f32.mrb[0].mxu0
      %443 = vdwg.mxu0
      %444 = vmatprep.subr.bf16.mxu0 0
      %445 = vmatpush1.bf16.msra.mxu0 %v401
      %446 = vmatprep.subr.bf16.mxu0 0
      %447 = vmatpush1.bf16.msra.mxu0 0
      %448 = vmatprep.subr.bf16.mxu0 0
      %449 = vmatpush1.bf16.msra.mxu0 0
      %450 = vmatprep.subr.bf16.mxu0 0
      %451 = vmatpush1.bf16.msra.mxu0 0
      %452 = vmatprep.subr.bf16.mxu0 0
      %453 = vmatpush1.bf16.msra.mxu0 0
      %454 = vmatprep.subr.bf16.mxu0 0
      %455 = vmatpush1.bf16.msra.mxu0 0
      %456 = vmatprep.subr.bf16.mxu0 0
      %457 = vmatpush1.bf16.msra.mxu0 0
      %458 = vmatprep.subr.bf16.mxu0 0
      %459 = vmatpush1.bf16.msra.mxu0 0
      %460 = vmatprep.subr.bf16.mxu0 0
      %461 = vmatpush1.bf16.msra.mxu0 0
      %462 = vmatprep.subr.bf16.mxu0 0
      %463 = vmatpush1.bf16.msra.mxu0 0
      %464 = vmatprep.subr.bf16.mxu0 0
      %465 = vmatpush1.bf16.msra.mxu0 0
      %466 = vmatprep.subr.bf16.mxu0 0
      %467 = vmatpush1.bf16.msra.mxu0 0
      %468 = vmatprep.subr.bf16.mxu0 0
      %469 = vmatpush1.bf16.msra.mxu0 0
      %470 = vmatprep.subr.bf16.mxu0 0
      %471 = vmatpush1.bf16.msra.mxu0 0
      %472 = vmatprep.subr.bf16.mxu0 0
      %473 = vmatpush1.bf16.msra.mxu0 0
      %474 = vmatprep.subr.bf16.mxu0 0
      %475 = vmatpush1.bf16.msra.mxu0 0
      %476 = vmatprep.mubr.bf16.mxu0 0
      %477 = vmatmul.mubr.bf16.gmra.mrb[0].mxu0 %v395
      %v478 = vpop.f32.mrb[0].mxu0
      %v479 = vadd.f32 %v389, %v478
      %v480 = vpop.f32.mrb[0].mxu0
      %v481 = vpop.f32.mrb[0].mxu0
      %v482 = vpop.f32.mrb[0].mxu0
      %483 = vdwg.mxu0
      %s484 = scalar_lea.vmem %s1, 4
      %v485 = vld [vmem:[%s484] sm:$0x3]
      %486 = vrot.lane.b32.xlu0 %v279, 92
      %v487 = vpop.permute.xlu0 %486
      %488 = vrot.lane.b32.xlu0 %v281, 92
      %v489 = vpop.permute.xlu0 %488
      %490 = vrot.lane.b32.xlu0 %v283, 92
      %v491 = vpop.permute.xlu0 %490
      %vm492 = vcmask 752640
      %v493 = vsel %vm492, %v487, %v489
      %v494 = vsel %vm492, %v489, %v491
      %v496 = vsel %vm299, %v485, 0
      %v499 = vsel %vm303, %v493, 0
      %v502 = vsel %vm303, %v494, 0
      %v505 = vsel %vm303, %v491, 0
      %507 = vmatprep.subr.bf16.mxu0 %v502
      %508 = vmatpush1.bf16.msra.mxu0 %v499
      %509 = vmatprep.subr.bf16.mxu0 0
      %510 = vmatpush1.bf16.msra.mxu0 0
      %511 = vmatprep.subr.bf16.mxu0 0
      %512 = vmatpush1.bf16.msra.mxu0 0
      %513 = vmatprep.subr.bf16.mxu0 0
      %514 = vmatpush1.bf16.msra.mxu0 0
      %515 = vmatprep.subr.bf16.mxu0 0
      %516 = vmatpush1.bf16.msra.mxu0 0
      %517 = vmatprep.subr.bf16.mxu0 0
      %518 = vmatpush1.bf16.msra.mxu0 0
      %519 = vmatprep.subr.bf16.mxu0 0
      %520 = vmatpush1.bf16.msra.mxu0 0
      %521 = vmatprep.subr.bf16.mxu0 0
      %522 = vmatpush1.bf16.msra.mxu0 0
      %523 = vmatprep.subr.bf16.mxu0 0
      %524 = vmatpush1.bf16.msra.mxu0 0
      %525 = vmatprep.subr.bf16.mxu0 0
      %526 = vmatpush1.bf16.msra.mxu0 0
      %527 = vmatprep.subr.bf16.mxu0 0
      %528 = vmatpush1.bf16.msra.mxu0 0
      %529 = vmatprep.subr.bf16.mxu0 0
      %530 = vmatpush1.bf16.msra.mxu0 0
      %531 = vmatprep.subr.bf16.mxu0 0
      %532 = vmatpush1.bf16.msra.mxu0 0
      %533 = vmatprep.subr.bf16.mxu0 0
      %534 = vmatpush1.bf16.msra.mxu0 0
      %535 = vmatprep.subr.bf16.mxu0 0
      %536 = vmatpush1.bf16.msra.mxu0 0
      %537 = vmatprep.subr.bf16.mxu0 0
      %538 = vmatpush1.bf16.msra.mxu0 0
      %539 = vmatprep.mubr.bf16.mxu0 0
      %540 = vmatmul.mubr.bf16.gmra.mrb[0].mxu0 %v496
      %v541 = vpop.f32.mrb[0].mxu0
      %v542 = vadd.f32 0.0, %v541
      %v543 = vpop.f32.mrb[0].mxu0
      %v544 = vadd.f32 0.0, %v543
      %v545 = vpop.f32.mrb[0].mxu0
      %v546 = vpop.f32.mrb[0].mxu0
      %547 = vdwg.mxu0
      %548 = vmatprep.subr.bf16.mxu0 0
      %549 = vmatpush1.bf16.msra.mxu0 %v505
      %550 = vmatprep.subr.bf16.mxu0 0
      %551 = vmatpush1.bf16.msra.mxu0 0
      %552 = vmatprep.subr.bf16.mxu0 0
      %553 = vmatpush1.bf16.msra.mxu0 0
      %554 = vmatprep.subr.bf16.mxu0 0
      %555 = vmatpush1.bf16.msra.mxu0 0
      %556 = vmatprep.subr.bf16.mxu0 0
      %557 = vmatpush1.bf16.msra.mxu0 0
      %558 = vmatprep.subr.bf16.mxu0 0
      %559 = vmatpush1.bf16.msra.mxu0 0
      %560 = vmatprep.subr.bf16.mxu0 0
      %561 = vmatpush1.bf16.msra.mxu0 0
      %562 = vmatprep.subr.bf16.mxu0 0
      %563 = vmatpush1.bf16.msra.mxu0 0
      %564 = vmatprep.subr.bf16.mxu0 0
      %565 = vmatpush1.bf16.msra.mxu0 0
      %566 = vmatprep.subr.bf16.mxu0 0
      %567 = vmatpush1.bf16.msra.mxu0 0
      %568 = vmatprep.subr.bf16.mxu0 0
      %569 = vmatpush1.bf16.msra.mxu0 0
      %570 = vmatprep.subr.bf16.mxu0 0
      %571 = vmatpush1.bf16.msra.mxu0 0
      %572 = vmatprep.subr.bf16.mxu0 0
      %573 = vmatpush1.bf16.msra.mxu0 0
      %574 = vmatprep.subr.bf16.mxu0 0
      %575 = vmatpush1.bf16.msra.mxu0 0
      %576 = vmatprep.subr.bf16.mxu0 0
      %577 = vmatpush1.bf16.msra.mxu0 0
      %578 = vmatprep.subr.bf16.mxu0 0
      %579 = vmatpush1.bf16.msra.mxu0 0
      %580 = vmatprep.mubr.bf16.mxu0 0
      %581 = vmatmul.mubr.bf16.gmra.mrb[0].mxu0 %v496
      %v582 = vpop.f32.mrb[0].mxu0
      %v583 = vadd.f32 0.0, %v582
      %v584 = vpop.f32.mrb[0].mxu0
      %v585 = vpop.f32.mrb[0].mxu0
      %v586 = vpop.f32.mrb[0].mxu0
      %587 = vdwg.mxu0
      %v588 = vadd.f32 %v438, %v542
      %v589 = vadd.f32 %v440, %v544
      %v590 = vadd.f32 %v479, %v583
      %592 = vrot.lane.b32.xlu0 %v588, 126
      %v593 = vpop.permute.xlu0 %592
      %595 = vrot.lane.b32.xlu0 %v588, 124
      %v596 = vpop.permute.xlu0 %595
      %598 = vrot.lane.b32.xlu0 %v588, 122
      %v599 = vpop.permute.xlu0 %598
      %601 = vrot.lane.b32.xlu0 %v588, 120
      %v602 = vpop.permute.xlu0 %601
      %604 = vrot.lane.b32.xlu0 %v588, 118
      %v605 = vpop.permute.xlu0 %604
      %607 = vrot.lane.b32.xlu0 %v588, 116
      %v608 = vpop.permute.xlu0 %607
      %611 = vrot.lane.b32.xlu0 %v588, 114
      %v612 = vpop.permute.xlu0 %611
      %613 = vrot.lane.b32.xlu0 %v589, 114
      %v614 = vpop.permute.xlu0 %613
      %vm615 = vcmask 932864
      %v616 = vsel %vm615, %v612, %v614
      %618 = vrot.lane.b32.xlu0 %v589, 112
      %v619 = vpop.permute.xlu0 %618
      %621 = vrot.lane.b32.xlu0 %v589, 110
      %v622 = vpop.permute.xlu0 %621
      %624 = vrot.lane.b32.xlu0 %v589, 108
      %v625 = vpop.permute.xlu0 %624
      %627 = vrot.lane.b32.xlu0 %v589, 106
      %v628 = vpop.permute.xlu0 %627
      %630 = vrot.lane.b32.xlu0 %v589, 104
      %v631 = vpop.permute.xlu0 %630
      %633 = vrot.lane.b32.xlu0 %v589, 102
      %v634 = vpop.permute.xlu0 %633
      %637 = vrot.lane.b32.xlu0 %v589, 100
      %v638 = vpop.permute.xlu0 %637
      %639 = vrot.lane.b32.xlu0 %v590, 100
      %v640 = vpop.permute.xlu0 %639
      %vm641 = vcmask 818176
      %v642 = vsel %vm641, %v638, %v640
      %644 = vrot.lane.b32.xlu0 %v590, 98
      %v645 = vpop.permute.xlu0 %644
      %vm647 = vcmask 130048
      %v648 = vsel %vm647, %v588, %v593
      %vm649 = vcmask 261120
      %v650 = vsel %vm649, %v648, %v596
      %vm651 = vcmask 392192
      %v652 = vsel %vm651, %v650, %v599
      %vm653 = vcmask 523264
      %v654 = vsel %vm653, %v652, %v602
      %vm655 = vcmask 654336
      %v656 = vsel %vm655, %v654, %v605
      %vm657 = vcmask 785408
      %v658 = vsel %vm657, %v656, %v608
      %vm659 = vcmask 916480
      %v660 = vsel %vm659, %v658, %v616
      %v661 = vsel %vm647, %v619, %v622
      %v662 = vsel %vm649, %v661, %v625
      %v663 = vsel %vm651, %v662, %v628
      %v664 = vsel %vm653, %v663, %v631
      %v665 = vsel %vm655, %v664, %v634
      %v666 = vsel %vm657, %v665, %v642
      %v667 = vsel %vm659, %v666, %v645
      %v668 = vpack.c.bf16 %v660, %v660
      %v669 = vpack.c.bf16 %v667, %v667
      %v672 = vcombine.low %v668, %v669
      %v674 = vunpack.c.l.s4 1983009808
      %v675 = vunpack.c.0.s8 %v674
      %v676 = vlaneseq
      %v677 = vshrl.u32 %v676, 7
      %v678 = vsub.s32 %v675, %v677
      %v679 = vrot.slane %v672, %v678
      %681 = vst [vmem:[%s210] sm:$0xf] %v679
      %v682 = vsel %vm277, %v660, 0.0
      %v683 = vsel %vm277, %v667, 0.0
      %v684 = vadd.f32 %v682, %v683
      %685 = vadd.xlane.f32.xlu0 %v684
      %v686 = vpop.xlane.xlu0 %685
      %vm687 = vcmask 3072
      %688 = vst.msk [vmem:[%s214] sm:$0xf] %vm687, %v686
      %v689 = vmul.f32 %v660, %v660
      %v690 = vmul.f32 %v667, %v667
      %v691 = vsel %vm277, %v689, 0.0
      %v692 = vsel %vm277, %v690, 0.0
      %v693 = vadd.f32 %v691, %v692
      %694 = vadd.xlane.f32.xlu0 %v693
      %v695 = vpop.xlane.xlu0 %694
      %696 = vst.msk [vmem:[%s218] sm:$0xf] %vm687, %v695
      %p697 = scmp.lt.s32.totalorder %s16, 1
      %s698 = scalar_select %p697, %s16, 1
      %s699 = smul.addr %s698, 2
      %s700 = smul.addr %s699, 2
      %s701 = scalar_lea.vmem %s2, %s700
      %p702 = scmp.lt.s32.totalorder %s16, 1
      %s703 = scalar_select %p702, %s16, 1
      %s704 = smul.addr %s703, 4
      %s705 = scalar_lea.vmem %s3, %s704
      %p706 = scmp.lt.s32.totalorder %s16, 1
      %s707 = scalar_select %p706, %s16, 1
      %s708 = smul.addr %s707, 4
      %s709 = scalar_lea.vmem %s4, %s708
      // Predicated region
      $region29: #{dfem_block_forward.2} parent=27 // pred_check
        %p710 = pneg %p81
      $region30: #{dfem_block_forward.2} parent=27 // pred_check_branch
        %712 = sbr.rel (%p710) target = $region32
      $region31: #{dfem_block_forward.2} parent=27 // pred_region
        _
      $region32: #{dfem_block_forward.2} parent=27 // pred_fallthru
        _
      // Predicated region
      $region33: #{dfem_block_forward.2} parent=27 // pred_check
        %p713 = pneg %p107
      $region34: #{dfem_block_forward.2} parent=27 // pred_check_branch
        %715 = sbr.rel (%p713) target = $region36
      $region35: #{dfem_block_forward.2} parent=27 // pred_region
        _
      $region36: #{dfem_block_forward.2} parent=27 // pred_fallthru
        _
      // Predicated region
      $region37: #{dfem_block_forward.2} parent=27 // pred_check
        %p716 = pneg %p133
      $region38: #{dfem_block_forward.2} parent=27 // pred_check_branch
        %718 = sbr.rel (%p716) target = $region40
      $region39: #{dfem_block_forward.2} parent=27 // pred_region
        _
      $region40: #{dfem_block_forward.2} parent=27 // pred_fallthru
        _
    $region28: #{dfem_block_forward.2} parent=5 // pred_fallthru
      _
    %p719 = scmp.le.s32.totalorder 2, %s11
    // Predicated region
    $region41: #{dfem_block_forward.2} parent=5 // pred_check
      %p720 = pneg %p719
    $region42: #{dfem_block_forward.2} parent=5 // pred_check_branch
      %722 = sbr.rel (%p720) target = $region44
    $region43: #{dfem_block_forward.2} parent=5 // pred_region
      %s723 = ssub.s32 %s11, 2
      // Predicated region
      $region45: #{dfem_block_forward.2} parent=43 // pred_check
        %p724 = pneg %p87
      $region46: #{dfem_block_forward.2} parent=43 // pred_check_branch
        %726 = sbr.rel (%p724) target = $region48
      $region47: #{dfem_block_forward.2} parent=43 // pred_region
        %p727 = scmp.lt.s32.totalorder %s17, 1
        %s728 = scalar_select %p727, %s17, 1
        %s729 = smul.addr %s728, 2
        %s730 = smul.addr %s729, 2
        %s731 = scalar_lea.vmem %s2, %s730
      $region48: #{dfem_block_forward.2} parent=43 // pred_fallthru
        _
      // Predicated region
      $region49: #{dfem_block_forward.2} parent=43 // pred_check
        %p732 = pneg %p113
      $region50: #{dfem_block_forward.2} parent=43 // pred_check_branch
        %734 = sbr.rel (%p732) target = $region52
      $region51: #{dfem_block_forward.2} parent=43 // pred_region
        %p735 = scmp.lt.s32.totalorder %s17, 1
        %s736 = scalar_select %p735, %s17, 1
        %s737 = smul.addr %s736, 4
        %s738 = scalar_lea.vmem %s3, %s737
      $region52: #{dfem_block_forward.2} parent=43 // pred_fallthru
        _
      // Predicated region
      $region53: #{dfem_block_forward.2} parent=43 // pred_check
        %p739 = pneg %p139
      $region54: #{dfem_block_forward.2} parent=43 // pred_check_branch
        %741 = sbr.rel (%p739) target = $region56
      $region55: #{dfem_block_forward.2} parent=43 // pred_region
        %p742 = scmp.lt.s32.totalorder %s17, 1
        %s743 = scalar_select %p742, %s17, 1
        %s744 = smul.addr %s743, 4
        %s745 = scalar_lea.vmem %s4, %s744
      $region56: #{dfem_block_forward.2} parent=43 // pred_fallthru
        _
    $region44: #{dfem_block_forward.2} parent=5 // pred_fallthru
      _
  $region6: #{dfem_block_forward.2} parent=0 // loop_footer
    %s15 = sadd.s32 1, %s11
  $region7: #{dfem_block_forward.2} parent=0 // loop_footer_branch
    %10 = sbr.rel target = $region3
  $region8: #{dfem_block_forward.2} parent=0 // loop_exit
    _

</llo_original>
